<compile_context>
chip_gen: v7x
topology: tpu7x:2x2x1
jax: 0.10.0
libtpu: 0.0.40
codegen_flags: <defaults>
</compile_context>

<pallas_src>
import jax
import jax.numpy as jnp
from jax.experimental import pallas as pl
from jax.experimental.pallas import tpu as pltpu


def _round_up(x: int, m: int) -> int:
    return (x + m - 1) // m * m


def _linear_kernel(x_ref, w_ref, b_ref, o_ref):
    # x_ref: (tm, H_in) f32   w_ref: (H_in, tn) bf16   b_ref: (1, tn) f32
    # bf16 MXU inputs, f32 accumulation.
    x_bf16 = x_ref[...].astype(jnp.bfloat16)
    acc = jnp.dot(x_bf16, w_ref[...], preferred_element_type=jnp.float32)
    o_ref[...] = (acc + b_ref[...]).astype(o_ref.dtype)


def audio_projector(x, weight, bias, *, tile_m=256, tile_n=512):
    """Pallas equivalent of nn.Linear(audio_hidden, llm_hidden)(x).

    x:      (B, S, H_audio)
    weight: (H_audio, H_llm)   (transposed vs. PyTorch's (out, in) layout)
    bias:   (H_llm,)
    returns (B, S, H_llm), dtype of x.
    """
    B, S, H_in = x.shape
    assert weight.shape[0] == H_in
    H_out = weight.shape[1]
    M = B * S
    out_dtype = x.dtype

    # ---- tile / padding choices ------------------------------------------
    # tile_m: multiple of 128 (works on v5e 128-wide MXU and v6e/v7x 256-wide).
    tm = max(8, _round_up(tile_m, 128))
    M_pad = _round_up(M, tm)

    # Output lane dim must be a multiple of 128 for dense (unmasked) stores.
    H_out_128 = _round_up(H_out, 128)
    tn = min(_round_up(tile_n, 128), H_out_128)
    H_out_pad = _round_up(H_out_128, tn)

    # ---- host-side prep: flatten + pad + bf16 weight ---------------------
    x2 = x.reshape(M, H_in)
    if M_pad != M:
        x2 = jnp.pad(x2, ((0, M_pad - M), (0, 0)))

    w = weight.astype(jnp.bfloat16)
    b2 = bias.astype(jnp.float32).reshape(1, H_out)
    if H_out_pad != H_out:
        w = jnp.pad(w, ((0, 0), (0, H_out_pad - H_out)))
        b2 = jnp.pad(b2, ((0, 0), (0, H_out_pad - H_out)))

    n_blocks = H_out_pad // tn
    m_blocks = M_pad // tm
    grid = (n_blocks, m_blocks)  # N outer, M inner: weight block reused over M

    # ---- scheduler hints ---------------------------------------------------
    out_itemsize = jnp.dtype(out_dtype).itemsize
    cost = pl.CostEstimate(
        flops=2 * M_pad * H_in * H_out_pad,
        transcendentals=0,
        bytes_accessed=(x2.size * x2.dtype.itemsize
                        + w.size * w.dtype.itemsize
                        + b2.size * b2.dtype.itemsize
                        + M_pad * H_out_pad * out_itemsize),
    )

    # VMEM footprint: 2x x-tile (double-buffered), 1x weight/bias block
    # (single-buffered), 2x out-tile.  Give 2x headroom, clamp to [16, 64] MiB
    # (64 MiB = v7x physical per-TC VMEM).
    vmem_needed = (2 * tm * H_in * x2.dtype.itemsize
                   + H_in * tn * 2          # bf16 weight block
                   + tn * 4                 # f32 bias block
                   + 2 * tm * tn * out_itemsize)
    vmem_limit = int(min(64 * 2**20, max(16 * 2**20, 2 * vmem_needed)))

    out2 = pl.pallas_call(
        _linear_kernel,
        out_shape=jax.ShapeDtypeStruct((M_pad, H_out_pad), out_dtype),
        grid_spec=pltpu.PrefetchScalarGridSpec(
            num_scalar_prefetch=0,
            grid=grid,
            in_specs=[
                # x tile: changes every (inner) M step -> default double-buffer.
                pl.BlockSpec((tm, H_in), lambda n, m: (m, 0)),
                # weight block: constant over the inner M sweep -> single buffer.
                pl.BlockSpec((H_in, tn), lambda n, m: (0, n),
                             pipeline_mode=pl.Buffered(1)),
                # bias block: same, single buffer.
                pl.BlockSpec((1, tn), lambda n, m: (0, n),
                             pipeline_mode=pl.Buffered(1)),
            ],
            out_specs=pl.BlockSpec((tm, tn), lambda n, m: (m, n)),
        ),
        compiler_params=pltpu.CompilerParams(
            # Both axes are fully independent (no reduction axis is tiled),
            # so both can shard across the 2 TensorCores on v7x.
            dimension_semantics=("parallel", "parallel"),
            vmem_limit_bytes=vmem_limit,
        ),
        cost_estimate=cost,
    )(x2, w, b2)

    # Strip row / lane padding and restore (B, S, H_llm).
    return out2[:M, :H_out].reshape(B, S, H_out)


if __name__ == "__main__":
    # Small synthetic config (audio_hidden_size=32, hidden_size=64).
    # S=75 deliberately does NOT divide the tile -> exercises M padding;
    # H_LLM=64 < 128 -> exercises lane padding of the output.
    B, S, H_AUDIO, H_LLM = 2, 75, 32, 64

    key = jax.random.PRNGKey(0)
    kx, kw, kb = jax.random.split(key, 3)

    x = jax.random.normal(kx, (B, S, H_AUDIO), dtype=jnp.float32)
    # nn.Linear(H_AUDIO, H_LLM) parameters (weight stored transposed: (in, out)).
    weight = jax.random.normal(kw, (H_AUDIO, H_LLM), dtype=jnp.float32) * 0.02
    bias = jax.random.normal(kb, (H_LLM,), dtype=jnp.float32) * 0.01

    # f32 reference (same math as torch nn.Linear); kernel uses bf16 MXU inputs
    # with f32 accumulation, so tolerance is loosened accordingly.
    ref = x @ weight + bias

    # Small explicit tiles -> multiple grid steps even at this tiny size.
    out = audio_projector(x, weight, bias, tile_m=128, tile_n=128)
    out = jax.block_until_ready(out)
    assert out.shape == (B, S, H_LLM)
    assert jnp.allclose(out, ref, atol=1e-2, rtol=1e-2), float(
        jnp.max(jnp.abs(out - ref)))

    # Default (production-oriented) tiling path.
    out2 = jax.block_until_ready(audio_projector(x, weight, bias))
    assert out2.shape == (B, S, H_LLM)
    assert jnp.allclose(out2, ref, atol=1e-2, rtol=1e-2), float(
        jnp.max(jnp.abs(out2 - ref)))

    print("KERNEL_OK")
</pallas_src>

<mosaic_0001>
module attributes {stable_mosaic.version = 11 : i64} {
  func.func @_linear_kernel(%arg0: i32, %arg1: i32, %arg2: memref<128x32xf32, #tpu.memory_space<vmem>>, %arg3: memref<32x128xbf16, #tpu.memory_space<vmem>>, %arg4: memref<1x128xf32, #tpu.memory_space<vmem>>, %arg5: memref<128x128xf32, #tpu.memory_space<vmem>>) attributes {dimension_semantics = [#tpu.dimension_semantics<parallel>, #tpu.dimension_semantics<parallel>], iteration_bounds = array<i64: 1, 2>, scalar_prefetch = 0 : i64, scratch_operands = 0 : i64, tpu.core_type = #tpu.core_type<tc>, window_params = [{transform_indices = @transform_0, window_bounds = array<i64: 128, 32>}, {pipeline_mode = #tpu.pipeline_mode<synchronous>, transform_indices = @transform_1, window_bounds = array<i64: 32, 128>}, {pipeline_mode = #tpu.pipeline_mode<synchronous>, transform_indices = @transform_2, window_bounds = array<i64: 1, 128>}, {transform_indices = @transform_3, window_bounds = array<i64: 128, 128>}]} {
    %c0 = arith.constant 0 : index
    %c0_0 = arith.constant 0 : index
    %0 = vector.load %arg2[%c0, %c0_0] : memref<128x32xf32, #tpu.memory_space<vmem>>, vector<128x32xf32>
    %1 = arith.truncf %0 : vector<128x32xf32> to vector<128x32xbf16>
    %c0_1 = arith.constant 0 : index
    %c0_2 = arith.constant 0 : index
    %2 = vector.load %arg3[%c0_1, %c0_2] : memref<32x128xbf16, #tpu.memory_space<vmem>>, vector<32x128xbf16>
    %cst = arith.constant dense<0.000000e+00> : vector<128x128xf32>
    %3 = tpu.matmul %1, %2, %cst {dimension_numbers = #tpu.dot_dimension_numbers<[1], [0], [0], [1], [0, 0, 1, 1], [], []>} : vector<128x32xbf16>, vector<32x128xbf16>, vector<128x128xf32> -> vector<128x128xf32>
    %c0_3 = arith.constant 0 : index
    %c0_4 = arith.constant 0 : index
    %4 = vector.load %arg4[%c0_3, %c0_4] : memref<1x128xf32, #tpu.memory_space<vmem>>, vector<1x128xf32>
    %5 = vector.broadcast %4 : vector<1x128xf32> to vector<128x128xf32>
    %6 = arith.addf %3, %5 : vector<128x128xf32>
    %c0_5 = arith.constant 0 : index
    %c0_6 = arith.constant 0 : index
    %7 = vector.load %arg5[%c0_5, %c0_6] : memref<128x128xf32, #tpu.memory_space<vmem>>, vector<128x128xf32>
    tpu.vector_store %arg5[%c0_5, %c0_6], %6 {strides = array<i32>} : memref<128x128xf32, #tpu.memory_space<vmem>>, vector<128x128xf32>,
    return
  }
  func.func @transform_0(%arg0: i32, %arg1: i32) -> (i32, i32) {
    %c0_i32 = arith.constant 0 : i32
    %c0_i32_0 = arith.constant 0 : i32
    return %arg1, %c0_i32 : i32, i32
  }
  func.func @transform_1(%arg0: i32, %arg1: i32) -> (i32, i32) {
    %c0_i32 = arith.constant 0 : i32
    %c0_i32_0 = arith.constant 0 : i32
    return %c0_i32, %arg0 : i32, i32
  }
  func.func @transform_2(%arg0: i32, %arg1: i32) -> (i32, i32) {
    %c0_i32 = arith.constant 0 : i32
    %c0_i32_0 = arith.constant 0 : i32
    return %c0_i32, %arg0 : i32, i32
  }
  func.func @transform_3(%arg0: i32, %arg1: i32) -> (i32, i32) {
    %c0_i32 = arith.constant 0 : i32
    return %arg1, %arg0 : i32, i32
  }
}

</mosaic_0001>

<llo_original>
// kernel: tpu_custom_call.1
$region0: #{tpu_custom_call.1}
  #allocation0 [shape = 'u32[]', space=smem, size = 0x4, offset = 0x4, fixed_abs, tag = 'smem constant byte address 0x4 - core index']
  #allocation1 [shape = 'u32[144,128]{1,0:T(1,128)}', space=vmem, size = 0x12000, scoped, tag = 'internal scratch']
  %s0 = inlined_call_operand.vmem [shape: f32[256,32], index: 0, kind: input, shape index: {}]
  %s1 = inlined_call_operand.vmem [shape: bf16[32,128], index: 1, kind: input, shape index: {}]
  %s2 = inlined_call_operand.vmem [shape: f32[1,128], index: 2, kind: input, shape index: {}]
  %s3 = inlined_call_operand.hbm [shape: f32[256,128], index: 3, kind: output, shape index: {}]
  %s4 = sld [smem:[#allocation0]]
  $region45: #{tpu_custom_call.1} parent=0
    _
  %s6 = ssub.s32 1, %s4
  %s7 = scalar_select 0, %s6, %s4
  $region1: #{tpu_custom_call.1} parent=0
    #allocation2 [shape = 'u8[131072]{0}', space=vmem, size = 0x20000, scoped, tag = 'output window, operand 0']
    #allocation3 [shape = 's32[2]{0}', space=sflag, size = 0x8, scoped, tag = 'scoped memory for tpu_custom_call.1']
    %8 = vsyncpa [#allocation3], 0
    %s9 = scalar_lea.sflag [#allocation3], 1
    %10 = vsyncpa %s9, 0
    loop: start=0, step=1, limit=4
    $region2: #{tpu_custom_call.1} parent=1 // loop_pre_header
      _
    $region3: #{tpu_custom_call.1} parent=1 // loop_header
      %s12 = sphi 0, %s16
      %p13 = scmp.ge.s32.totalorder %s12, 4
      %s19 = sphi 0, %s31
      %s20 = sphi 0, %s27
      %s21 = sphi 0, %s19
      %s22 = sphi 0, %s20
      %s23 = sphi 0, %s21
      %s24 = sphi 0, %s22
      %s34 = sphi 0, %s36
      %s37 = sphi 0, %s34
      %s38 = sphi 0, %s37
      %s54 = sphi 0, %s38
      %s60 = sphi 0, %s62
      %s63 = sphi 0, %s60
      %s64 = sphi 0, %s63
      %s80 = sphi 0, %s64
      %s86 = sphi 0, %s88
      %s89 = sphi 0, %s86
      %s90 = sphi 0, %s89
      %s106 = sphi 0, %s90
      %s114 = sphi 0, %s116
      %s117 = sphi 0, %s114
      %s118 = sphi 0, %s117
      %s134 = sphi 0, %s118
    $region4: #{tpu_custom_call.1} parent=1 // loop_header_branch
      %15 = sbr.rel (%p13) target = $region8
    $region5: #{tpu_custom_call.1} parent=1 // loop_body
      %s17 = ssub.s32 %s12, 1
      %s18 = ssub.s32 %s12, 2
      %s25 = sadd.s32 1, %s20
      %p26 = scmp.ge.s32.totalorder %s25, 2
      %s27 = scalar_select %p26, 0, %s25
      %s28 = sadd.s32 1, %s19
      %s29 = scalar_select %p26, %s28, %s19
      %p30 = scmp.ge.s32.totalorder %s29, 1
      %s31 = scalar_select %p30, 0, %s29
      %s32 = ssub.s32 %s20, %s27
      %p33 = scmp.eq.s32.totalorder %s32, 0
      %s35 = sadd.s32 %s34, 1
      %s36 = scalar_select %p33, %s34, %s35
      %p39 = pneg %p33
      %p40 = scmp.eq.s32.totalorder %s12, 1
      %p41 = por %p39, %p40
      %p42 = scmp.ne.s32.totalorder %s34, %s37
      %p43 = scmp.eq.s32.totalorder %s12, 0
      %p44 = por %p42, %p43
      %p45 = scmp.ne.s32.totalorder %s34, %s37
      %p46 = scmp.eq.s32.totalorder %s17, 1
      %p47 = por %p45, %p46
      %p48 = scmp.ne.s32.totalorder %s37, %s38
      %p49 = scmp.eq.s32.totalorder %s17, 0
      %p50 = por %p48, %p49
      %p51 = scmp.ne.s32.totalorder %s37, %s38
      %p52 = scmp.eq.s32.totalorder %s18, 1
      %p53 = por %p51, %p52
      %p55 = scmp.ne.s32.totalorder %s38, %s54
      %p56 = scmp.eq.s32.totalorder %s18, 0
      %p57 = por %p55, %p56
      %s58 = ssub.s32 %s19, %s31
      %p59 = scmp.eq.s32.totalorder %s58, 0
      %s61 = sadd.s32 %s60, 1
      %s62 = scalar_select %p59, %s60, %s61
      %p65 = pneg %p59
      %p66 = scmp.eq.s32.totalorder %s12, 1
      %p67 = por %p65, %p66
      %p68 = scmp.ne.s32.totalorder %s60, %s63
      %p69 = scmp.eq.s32.totalorder %s12, 0
      %p70 = por %p68, %p69
      %p71 = scmp.ne.s32.totalorder %s60, %s63
      %p72 = scmp.eq.s32.totalorder %s17, 1
      %p73 = por %p71, %p72
      %p74 = scmp.ne.s32.totalorder %s63, %s64
      %p75 = scmp.eq.s32.totalorder %s17, 0
      %p76 = por %p74, %p75
      %p77 = scmp.ne.s32.totalorder %s63, %s64
      %p78 = scmp.eq.s32.totalorder %s18, 1
      %p79 = por %p77, %p78
      %p81 = scmp.ne.s32.totalorder %s64, %s80
      %p82 = scmp.eq.s32.totalorder %s18, 0
      %p83 = por %p81, %p82
      %s84 = ssub.s32 %s19, %s31
      %p85 = scmp.eq.s32.totalorder %s84, 0
      %s87 = sadd.s32 %s86, 1
      %s88 = scalar_select %p85, %s86, %s87
      %p91 = pneg %p85
      %p92 = scmp.eq.s32.totalorder %s12, 1
      %p93 = por %p91, %p92
      %p94 = scmp.ne.s32.totalorder %s86, %s89
      %p95 = scmp.eq.s32.totalorder %s12, 0
      %p96 = por %p94, %p95
      %p97 = scmp.ne.s32.totalorder %s86, %s89
      %p98 = scmp.eq.s32.totalorder %s17, 1
      %p99 = por %p97, %p98
      %p100 = scmp.ne.s32.totalorder %s89, %s90
      %p101 = scmp.eq.s32.totalorder %s17, 0
      %p102 = por %p100, %p101
      %p103 = scmp.ne.s32.totalorder %s89, %s90
      %p104 = scmp.eq.s32.totalorder %s18, 1
      %p105 = por %p103, %p104
      %p107 = scmp.ne.s32.totalorder %s90, %s106
      %p108 = scmp.eq.s32.totalorder %s18, 0
      %p109 = por %p107, %p108
      %s110 = ssub.s32 %s20, %s27
      %s111 = ssub.s32 %s19, %s31
      %s112 = sor.u32 %s110, %s111
      %p113 = scmp.eq.s32.totalorder %s112, 0
      %s115 = sadd.s32 %s114, 1
      %s116 = scalar_select %p113, %s114, %s115
      %p119 = pneg %p113
      %p120 = scmp.eq.s32.totalorder %s12, 1
      %p121 = por %p119, %p120
      %p122 = scmp.ne.s32.totalorder %s114, %s117
      %p123 = scmp.eq.s32.totalorder %s12, 0
      %p124 = por %p122, %p123
      %p125 = scmp.ne.s32.totalorder %s114, %s117
      %p126 = scmp.eq.s32.totalorder %s17, 1
      %p127 = por %p125, %p126
      %p128 = scmp.ne.s32.totalorder %s117, %s118
      %p129 = scmp.eq.s32.totalorder %s17, 0
      %p130 = por %p128, %p129
      %p131 = scmp.ne.s32.totalorder %s117, %s118
      %p132 = scmp.eq.s32.totalorder %s18, 1
      %p133 = por %p131, %p132
      %p135 = scmp.ne.s32.totalorder %s118, %s134
      %p136 = scmp.eq.s32.totalorder %s18, 0
      %p137 = por %p135, %p136
      %p138 = scmp.le.s32.totalorder 1, %s12
      %p139 = scmp.lt.s32.totalorder %s12, 3
      %p140 = pnand %p138, %p139
      %p141 = pneg %p140
      // Predicated region
      $region9: #{tpu_custom_call.1} parent=5 // pred_check
        _
      $region10: #{tpu_custom_call.1} parent=5 // pred_check_branch
        %143 = sbr.rel (%p140) target = $region12
      $region11: #{tpu_custom_call.1} parent=5 // pred_region
        %s144 = ssub.s32 %s12, 1
        // Predicated region
        $region13: #{tpu_custom_call.1} parent=11 // pred_check
          %p145 = pneg %p76
        $region14: #{tpu_custom_call.1} parent=11 // pred_check_branch
          %147 = sbr.rel (%p145) target = $region16
        $region15: #{tpu_custom_call.1} parent=11 // pred_region
          %p148 = scmp.lt.s32.totalorder %s21, 0
          %s149 = scalar_select %p148, %s21, 0
          %s150 = smul.addr %s149, 4
          %s151 = scalar_lea.vmem %s1, %s150
        $region16: #{tpu_custom_call.1} parent=11 // pred_fallthru
          _
        // Predicated region
        $region17: #{tpu_custom_call.1} parent=11 // pred_check
          %p152 = pneg %p102
        $region18: #{tpu_custom_call.1} parent=11 // pred_check_branch
          %154 = sbr.rel (%p152) target = $region20
        $region19: #{tpu_custom_call.1} parent=11 // pred_region
          %p155 = scmp.lt.s32.totalorder %s21, 0
          %s156 = scalar_select %p155, %s21, 0
          %s157 = scalar_lea.vmem %s2, %s156
        $region20: #{tpu_custom_call.1} parent=11 // pred_fallthru
          _
      $region12: #{tpu_custom_call.1} parent=5 // pred_fallthru
        _
      %p158 = scmp.lt.s32.totalorder %s12, 2
      // Predicated region
      $region21: #{tpu_custom_call.1} parent=5 // pred_check
        %p159 = pneg %p158
      $region22: #{tpu_custom_call.1} parent=5 // pred_check_branch
        %161 = sbr.rel (%p159) target = $region24
      $region23: #{tpu_custom_call.1} parent=5 // pred_region
        // Predicated region
        $region25: #{tpu_custom_call.1} parent=23 // pred_check
          %p162 = pneg %p44
        $region26: #{tpu_custom_call.1} parent=23 // pred_check_branch
          %164 = sbr.rel (%p162) target = $region28
        $region27: #{tpu_custom_call.1} parent=23 // pred_region
          %s165 = smul.u32 16, %s20
          %p166 = scmp.lt.s32.totalorder %s165, 31
          %s167 = scalar_select %p166, %s165, 31
          %s168 = smul.addr %s167, 8
          %s169 = scalar_lea.vmem %s0, %s168
          %s170 = smul.u32 16, %s20
        $region28: #{tpu_custom_call.1} parent=23 // pred_fallthru
          _
      $region24: #{tpu_custom_call.1} parent=5 // pred_fallthru
        _
      %p171 = scmp.le.s32.totalorder 1, %s12
      %p172 = scmp.lt.s32.totalorder %s12, 3
      %p173 = pnand %p171, %p172
      %p174 = pneg %p173
      // Predicated region
      $region29: #{tpu_custom_call.1} parent=5 // pred_check
        _
      $region30: #{tpu_custom_call.1} parent=5 // pred_check_branch
        %176 = sbr.rel (%p173) target = $region32
      $region31: #{tpu_custom_call.1} parent=5 // pred_region
        %s177 = ssub.s32 %s12, 1
        %s178 = smul.u32 16, %s22
        %p179 = scmp.lt.s32.totalorder %s178, 31
        %s180 = scalar_select %p179, %s178, 31
        %s181 = smul.addr %s180, 8
        %s182 = scalar_lea.vmem %s0, %s181
        %p183 = pneg %p50
        %p184 = pneg %p47
        %p185 = scmp.lt.s32.totalorder %s21, 0
        %s186 = scalar_select %p185, %s21, 0
        %s187 = smul.addr %s186, 4
        %s188 = scalar_lea.vmem %s1, %s187
        %p189 = pneg %p76
        %p190 = pneg %p73
        %p191 = scmp.lt.s32.totalorder %s21, 0
        %s192 = scalar_select %p191, %s21, 0
        %s193 = scalar_lea.vmem %s2, %s192
        %p194 = pneg %p102
        %p195 = pneg %p99
        %p196 = pneg %p130
        %p197 = pneg %p127
        %s198 = sand.u32 %s117, 1
        %s199 = scalar_lea.sflag [#allocation3], %s198
        %s200 = sand.u32 %s117, 1
        %s201 = smul.addr %s200, 128
        %s202 = scalar_lea.vmem [#allocation2], %s201
        %s203 = smul.u32 16, %s22
        %p204 = scmp.lt.s32.totalorder %s203, 31
        %s205 = scalar_select %p204, %s203, 31
        %s206 = smul.addr %s205, 8
        %s207 = scalar_lea.vmem %s0, %s206
        %s208 = smul.u32 16, %s22
        %p209 = scmp.lt.s32.totalorder %s21, 0
        %s210 = scalar_select %p209, %s21, 0
        %s211 = smul.addr %s210, 4
        %s212 = scalar_lea.vmem %s1, %s211
        %p213 = scmp.lt.s32.totalorder %s21, 0
        %s214 = scalar_select %p213, %s21, 0
        %s215 = scalar_lea.vmem %s2, %s214
        %s216 = smul.u32 16, %s22
        %v218 = vld [vmem:[%s207] sm:$0xff]
        %v219 = vld [vmem:[%s207 + $0x8] sm:$0xff]
        %v220 = vld [vmem:[%s207 + $0x10] sm:$0xff]
        %v221 = vld [vmem:[%s207 + $0x18] sm:$0xff]
        %v222 = vld [vmem:[%s207 + $0x20] sm:$0xff]
        %v223 = vld [vmem:[%s207 + $0x28] sm:$0xff]
        %v224 = vld [vmem:[%s207 + $0x30] sm:$0xff]
        %v225 = vld [vmem:[%s207 + $0x38] sm:$0xff]
        %v226 = vld [vmem:[%s207 + $0x40] sm:$0xff]
        %v227 = vld [vmem:[%s207 + $0x48] sm:$0xff]
        %v228 = vld [vmem:[%s207 + $0x50] sm:$0xff]
        %v229 = vld [vmem:[%s207 + $0x58] sm:$0xff]
        %v230 = vld [vmem:[%s207 + $0x60] sm:$0xff]
        %v231 = vld [vmem:[%s207 + $0x68] sm:$0xff]
        %v232 = vld [vmem:[%s207 + $0x70] sm:$0xff]
        %v233 = vld [vmem:[%s207 + $0x78] sm:$0xff]
        %v234 = vpack.c.bf16 %v219, %v218
        %v235 = vpack.c.bf16 %v221, %v220
        %v236 = vpack.c.bf16 %v223, %v222
        %v237 = vpack.c.bf16 %v225, %v224
        %v238 = vpack.c.bf16 %v227, %v226
        %v239 = vpack.c.bf16 %v229, %v228
        %v240 = vpack.c.bf16 %v231, %v230
        %v241 = vpack.c.bf16 %v233, %v232
        %v242 = vld [vmem:[%s212] sm:$0xf]
        %v243 = vld [vmem:[%s212 + $0x4] sm:$0xf]
        %v244 = vld [vmem:[%s212 + $0x8] sm:$0xf]
        %v245 = vld [vmem:[%s212 + $0xc] sm:$0xf]
        %v246 = vld [vmem:[%s215] sm:$0x1]
        %v248 = vlaneseq
        %v249 = vshrl.u32 %v248, 7
        %v250 = vsub.s32 0, %v249
        %v251 = vrot.slane %v246, %v250
        %v257 = vunpack.c.l.b16 %v242
        %v258 = vunpack.c.l.b16 %v243
        %v259 = vunpack.c.l.b16 %v244
        %v260 = vunpack.c.l.b16 %v245
        %v261 = vpack.c.b16 %v258, %v257
        %v262 = vpack.c.b16 %v260, %v259
        %vm265 = vcmask 261120
        %v267 = vsel %vm265, %v234, 0
        %v270 = vsel %vm265, %v235, 0
        %v273 = vsel %vm265, %v236, 0
        %v276 = vsel %vm265, %v237, 0
        %v279 = vsel %vm265, %v238, 0
        %v282 = vsel %vm265, %v239, 0
        %v285 = vsel %vm265, %v240, 0
        %v288 = vsel %vm265, %v241, 0
        %290 = vmatprep.subr.bf16.mxu0 0
        %291 = vmatpush1.bf16.msra.mxu0 %v261
        %292 = vmatprep.subr.bf16.mxu0 0
        %293 = vmatpush1.bf16.msra.mxu0 %v262
        %294 = vmatprep.subr.bf16.mxu0 0
        %295 = vmatpush1.bf16.msra.mxu0 0
        %296 = vmatprep.subr.bf16.mxu0 0
        %297 = vmatpush1.bf16.msra.mxu0 0
        %298 = vmatprep.subr.bf16.mxu0 0
        %299 = vmatpush1.bf16.msra.mxu0 0
        %300 = vmatprep.subr.bf16.mxu0 0
        %301 = vmatpush1.bf16.msra.mxu0 0
        %302 = vmatprep.subr.bf16.mxu0 0
        %303 = vmatpush1.bf16.msra.mxu0 0
        %304 = vmatprep.subr.bf16.mxu0 0
        %305 = vmatpush1.bf16.msra.mxu0 0
        %306 = vmatprep.subr.bf16.mxu0 0
        %307 = vmatpush1.bf16.msra.mxu0 0
        %308 = vmatprep.subr.bf16.mxu0 0
        %309 = vmatpush1.bf16.msra.mxu0 0
        %310 = vmatprep.subr.bf16.mxu0 0
        %311 = vmatpush1.bf16.msra.mxu0 0
        %312 = vmatprep.subr.bf16.mxu0 0
        %313 = vmatpush1.bf16.msra.mxu0 0
        %314 = vmatprep.subr.bf16.mxu0 0
        %315 = vmatpush1.bf16.msra.mxu0 0
        %316 = vmatprep.subr.bf16.mxu0 0
        %317 = vmatpush1.bf16.msra.mxu0 0
        %318 = vmatprep.subr.bf16.mxu0 0
        %319 = vmatpush1.bf16.msra.mxu0 0
        %320 = vmatprep.subr.bf16.mxu0 0
        %321 = vmatpush1.bf16.msra.mxu0 0
        %322 = vmatprep.mubr.bf16.mxu0 0
        %323 = vmatmul.mubr.bf16.gmra.mrb[0].mxu0 %v267
        %v324 = vpop.f32.mrb[0].mxu0
        %v325 = vadd.f32 %v251, %v324
        %v326 = vpop.f32.mrb[0].mxu0
        %v327 = vpop.f32.mrb[0].mxu0
        %v328 = vadd.f32 %v251, %v327
        %v329 = vpop.f32.mrb[0].mxu0
        %330 = vmatprep.mubr.bf16.mxu0 0
        %331 = vmatmul.mubr.bf16.gmra.mrb[0].mxu0 %v270
        %v332 = vpop.f32.mrb[0].mxu0
        %v333 = vadd.f32 %v251, %v332
        %v334 = vpop.f32.mrb[0].mxu0
        %v335 = vpop.f32.mrb[0].mxu0
        %v336 = vadd.f32 %v251, %v335
        %v337 = vpop.f32.mrb[0].mxu0
        %338 = vmatprep.mubr.bf16.mxu0 0
        %339 = vmatmul.mubr.bf16.gmra.mrb[0].mxu0 %v273
        %v340 = vpop.f32.mrb[0].mxu0
        %v341 = vadd.f32 %v251, %v340
        %v342 = vpop.f32.mrb[0].mxu0
        %v343 = vpop.f32.mrb[0].mxu0
        %v344 = vadd.f32 %v251, %v343
        %v345 = vpop.f32.mrb[0].mxu0
        %346 = vmatprep.mubr.bf16.mxu0 0
        %347 = vmatmul.mubr.bf16.gmra.mrb[0].mxu0 %v276
        %v348 = vpop.f32.mrb[0].mxu0
        %v349 = vadd.f32 %v251, %v348
        %v350 = vpop.f32.mrb[0].mxu0
        %v351 = vpop.f32.mrb[0].mxu0
        %v352 = vadd.f32 %v251, %v351
        %v353 = vpop.f32.mrb[0].mxu0
        %354 = vmatprep.mubr.bf16.mxu0 0
        %355 = vmatmul.mubr.bf16.gmra.mrb[0].mxu0 %v279
        %v356 = vpop.f32.mrb[0].mxu0
        %v357 = vadd.f32 %v251, %v356
        %v358 = vpop.f32.mrb[0].mxu0
        %v359 = vpop.f32.mrb[0].mxu0
        %v360 = vadd.f32 %v251, %v359
        %v361 = vpop.f32.mrb[0].mxu0
        %362 = vmatprep.mubr.bf16.mxu0 0
        %363 = vmatmul.mubr.bf16.gmra.mrb[0].mxu0 %v282
        %v364 = vpop.f32.mrb[0].mxu0
        %v365 = vadd.f32 %v251, %v364
        %v366 = vpop.f32.mrb[0].mxu0
        %v367 = vpop.f32.mrb[0].mxu0
        %v368 = vadd.f32 %v251, %v367
        %v369 = vpop.f32.mrb[0].mxu0
        %370 = vmatprep.mubr.bf16.mxu0 0
        %371 = vmatmul.mubr.bf16.gmra.mrb[0].mxu0 %v285
        %v372 = vpop.f32.mrb[0].mxu0
        %v373 = vadd.f32 %v251, %v372
        %v374 = vpop.f32.mrb[0].mxu0
        %v375 = vpop.f32.mrb[0].mxu0
        %v376 = vadd.f32 %v251, %v375
        %v377 = vpop.f32.mrb[0].mxu0
        %378 = vmatprep.mubr.bf16.mxu0 0
        %379 = vmatmul.mubr.bf16.gmra.mrb[0].mxu0 %v288
        %v380 = vpop.f32.mrb[0].mxu0
        %v381 = vadd.f32 %v251, %v380
        %v382 = vpop.f32.mrb[0].mxu0
        %v383 = vpop.f32.mrb[0].mxu0
        %v384 = vadd.f32 %v251, %v383
        %v385 = vpop.f32.mrb[0].mxu0
        %386 = vdwg.mxu0
        %387 = vst [vmem:[%s202] sm:$0xff] %v325
        %388 = vst [vmem:[%s202 + $0x8] sm:$0xff] %v328
        %389 = vst [vmem:[%s202 + $0x10] sm:$0xff] %v333
        %390 = vst [vmem:[%s202 + $0x18] sm:$0xff] %v336
        %391 = vst [vmem:[%s202 + $0x20] sm:$0xff] %v341
        %392 = vst [vmem:[%s202 + $0x28] sm:$0xff] %v344
        %393 = vst [vmem:[%s202 + $0x30] sm:$0xff] %v349
        %394 = vst [vmem:[%s202 + $0x38] sm:$0xff] %v352
        %395 = vst [vmem:[%s202 + $0x40] sm:$0xff] %v357
        %396 = vst [vmem:[%s202 + $0x48] sm:$0xff] %v360
        %397 = vst [vmem:[%s202 + $0x50] sm:$0xff] %v365
        %398 = vst [vmem:[%s202 + $0x58] sm:$0xff] %v368
        %399 = vst [vmem:[%s202 + $0x60] sm:$0xff] %v373
        %400 = vst [vmem:[%s202 + $0x68] sm:$0xff] %v376
        %401 = vst [vmem:[%s202 + $0x70] sm:$0xff] %v381
        %402 = vst [vmem:[%s202 + $0x78] sm:$0xff] %v384
        %s403 = sand.u32 %s117, 1
        %s404 = scalar_lea.sflag [#allocation3], %s403
        %s405 = sand.u32 %s117, 1
        %s406 = smul.addr %s405, 128
        %s407 = scalar_lea.vmem [#allocation2], %s406
        // Predicated region
        $region33: #{tpu_custom_call.1} parent=31 // pred_check
          %p408 = pneg %p127
        $region34: #{tpu_custom_call.1} parent=31 // pred_check_branch
          %410 = sbr.rel (%p408) target = $region36
        $region35: #{tpu_custom_call.1} parent=31 // pred_region
          %s411 = smul.u32 16, %s22
          %s413 = ssub.s32 2048, 2048
          %414 = vsyncadd %s404, %s413
          %s415 = sadd.s32 %s21, %s411
          %s416 = smul.addr %s415, 128
          %s417 = scalar_lea.hbm %s3, %s416
          %s418 = sshll.u32 %s407, 4
          %s419 = int_to_ptr.vmem [resolvable:$true] %s418
          %424 = dma.vmem_to_hbm [thread:$0]  %s419, 2048, %s417, %s404, 128, 128, 8
        $region36: #{tpu_custom_call.1} parent=31 // pred_fallthru
          _
      $region32: #{tpu_custom_call.1} parent=5 // pred_fallthru
        _
      %p425 = scmp.le.s32.totalorder 2, %s12
      // Predicated region
      $region37: #{tpu_custom_call.1} parent=5 // pred_check
        %p426 = pneg %p425
      $region38: #{tpu_custom_call.1} parent=5 // pred_check_branch
        %428 = sbr.rel (%p426) target = $region40
      $region39: #{tpu_custom_call.1} parent=5 // pred_region
        %s429 = ssub.s32 %s12, 2
        // Predicated region
        $region41: #{tpu_custom_call.1} parent=39 // pred_check
          %p430 = pneg %p133
        $region42: #{tpu_custom_call.1} parent=39 // pred_check_branch
          %432 = sbr.rel (%p430) target = $region44
        $region43: #{tpu_custom_call.1} parent=39 // pred_region
          %s433 = sand.u32 %s118, 1
          %s434 = scalar_lea.sflag [#allocation3], %s433
          %s435 = sand.u32 %s118, 1
          %s436 = smul.addr %s435, 128
          %s437 = scalar_lea.vmem [#allocation2], %s436
          %438 = dma.done %s434, 2048
        $region44: #{tpu_custom_call.1} parent=39 // pred_fallthru
          _
      $region40: #{tpu_custom_call.1} parent=5 // pred_fallthru
        _
    $region6: #{tpu_custom_call.1} parent=1 // loop_footer
      %s16 = sadd.s32 1, %s12
    $region7: #{tpu_custom_call.1} parent=1 // loop_footer_branch
      %11 = sbr.rel target = $region3
    $region8: #{tpu_custom_call.1} parent=1 // loop_exit
      _
    %439 = vsyncpa [#allocation3], 1
    %s440 = scalar_lea.sflag [#allocation3], 1
    %441 = vsyncpa %s440, 1

</llo_original>
